<compile_context>
chip_gen: v7x
topology: tpu7x:2x2x1
jax: 0.10.0
libtpu: 0.0.40
codegen_flags: <defaults>
</compile_context>

<pallas_src>
from functools import partial

import jax
import jax.numpy as jnp
from jax.experimental import pallas as pl
from jax.experimental.pallas import tpu as pltpu


# ----------------------------------------------------------------------------
# Helpers
# ----------------------------------------------------------------------------
def _round_up(n, m):
    return ((n + m - 1) // m) * m


def _round_down(n, m):
    return (n // m) * m


def _activate(y, act):
    if act is None:
        return y
    if act == "tanh":
        return jnp.tanh(y)
    if act == "sigmoid":
        return jax.nn.sigmoid(y)
    if act == "relu":
        return jnp.maximum(y, 0.0)
    if act == "leaky_relu":
        return jnp.where(y >= 0.0, y, 0.01 * y)  # PyTorch default slope 0.01
    raise ValueError(f"unsupported activation: {act!r}")


def _vmem_budget_bytes():
    """Generation-aware VMEM budget: physical capacity minus ~16 MiB headroom."""
    try:
        cap = int(pltpu.get_tpu_info().vmem_capacity_bytes)
    except Exception:
        cap = 64 * 1024 * 1024  # conservative default (v7x per-TC)
    return max(cap - 16 * 1024 * 1024, 16 * 1024 * 1024)


# ----------------------------------------------------------------------------
# Fused MLP kernel: h = act(h @ W_l + b_l) for every layer of the group.
# refs = (x_ref, w0, b0, w1, b1, ..., o_ref)
# ----------------------------------------------------------------------------
def _mlp_kernel(*refs, n_layers, act, mxu_dtype):
    x_ref = refs[0]
    o_ref = refs[1 + 2 * n_layers]

    h = x_ref[...].astype(jnp.float32)
    for layer in range(n_layers):                      # unrolled at trace time
        w_ref = refs[1 + 2 * layer]
        b_ref = refs[2 + 2 * layer]
        # bf16 matmul on the MXU, f32 accumulation; bias + activation in f32.
        y = jnp.dot(h.astype(mxu_dtype), w_ref[...],
                    preferred_element_type=jnp.float32)
        y = y + b_ref[...].astype(jnp.float32)         # (1, F_out) broadcast
        h = _activate(y, act)
    o_ref[...] = h.astype(o_ref.dtype)


# ----------------------------------------------------------------------------
# One pallas_call over a group of consecutive layers.
# ----------------------------------------------------------------------------
def _call_group(x_p, group, act, out_dtype, mxu_dtype, vmem_budget,
                use_buffered):
    B_pad, in_pad = x_p.shape
    out_pad = group[-1][0].shape[1]
    n_layers = len(group)

    param_bytes = sum(w.size * w.dtype.itemsize + b.size * b.dtype.itemsize
                      for (w, b) in group)
    if not use_buffered:
        param_bytes *= 2  # default pipelining double-buffers each operand

    # VMEM-budget-derived batch tile (multiple of 8 sublanes).
    out_itemsize = jnp.dtype(out_dtype).itemsize
    widest = max([in_pad] + [w.shape[1] for (w, _) in group])
    per_row = (2 * in_pad * x_p.dtype.itemsize     # double-buffered x tile
               + 2 * out_pad * out_itemsize        # double-buffered out tile
               + 3 * widest * 4)                   # f32 intermediates
    avail = max(vmem_budget - param_bytes, per_row * 8)
    tile_b = max(8, min(_round_down(avail // per_row, 8), 2048, B_pad))
    # v7x has 2 TensorCores: give the "parallel" batch axis >= 2 steps.
    if tile_b >= B_pad and B_pad > 8:
        tile_b = _round_up(pl.cdiv(B_pad, 2), 8)
    grid = (pl.cdiv(B_pad, tile_b),)   # no over-padding: partial last block OK

    param_kwargs = {"pipeline_mode": pl.Buffered(1)} if use_buffered else {}
    in_specs = [pl.BlockSpec((tile_b, in_pad), lambda i: (i, 0))]
    flat_inputs = [x_p]
    for (w_p, b_p) in group:
        in_specs.append(pl.BlockSpec(w_p.shape, lambda i: (0, 0), **param_kwargs))
        in_specs.append(pl.BlockSpec(b_p.shape, lambda i: (0, 0), **param_kwargs))
        flat_inputs.append(w_p)
        flat_inputs.append(b_p)
    out_spec = pl.BlockSpec((tile_b, out_pad), lambda i: (i, 0))

    flops = 2 * B_pad * sum(w.shape[0] * w.shape[1] for (w, _) in group)
    transc = (B_pad * sum(w.shape[1] for (w, _) in group)
              if act in ("tanh", "sigmoid") else 0)
    bytes_acc = (x_p.size * x_p.dtype.itemsize
                 + sum(w.size * w.dtype.itemsize + b.size * b.dtype.itemsize
                       for (w, b) in group)
                 + B_pad * out_pad * out_itemsize)

    return pl.pallas_call(
        partial(_mlp_kernel, n_layers=n_layers, act=act, mxu_dtype=mxu_dtype),
        out_shape=jax.ShapeDtypeStruct((B_pad, out_pad), out_dtype),
        grid=grid,
        in_specs=in_specs,
        out_specs=out_spec,
        compiler_params=pltpu.CompilerParams(
            dimension_semantics=("parallel",),   # 2 TCs on v7x; no-op v5e/v6e
            vmem_limit_bytes=int(vmem_budget),
        ),
        cost_estimate=pl.CostEstimate(
            flops=int(flops),
            transcendentals=int(transc),
            bytes_accessed=int(bytes_acc)),
    )(*flat_inputs)


# ----------------------------------------------------------------------------
# Parameter init (mimics nn.Linear default: uniform +-1/sqrt(fan_in)).
# Weights stored pre-transposed as (in, out); biases packed as (1, out).
# ----------------------------------------------------------------------------
def init_transformer_params(key, input_size, layer_sizes):
    params = []
    prev = input_size
    for size in layer_sizes:
        key, kw, kb = jax.random.split(key, 3)
        bound = 1.0 / jnp.sqrt(prev)
        w = jax.random.uniform(kw, (prev, size), jnp.float32, -bound, bound)
        b = jax.random.uniform(kb, (1, size), jnp.float32, -bound, bound)
        params.append((w, b))
        prev = size
    return params


# ----------------------------------------------------------------------------
# Forward pass.
# ----------------------------------------------------------------------------
def transformer_forward(params, x, act="tanh", mxu_dtype=jnp.bfloat16):
    # dropout=0.0 and batch_norm=False (module defaults) => Linear + act only.
    # TODO(synk): Dropout / BatchNorm1d branches of __init__ are off by default
    # and are not implemented here.
    if act is not None and act not in ("tanh", "sigmoid", "relu", "leaky_relu"):
        raise ValueError(f"unsupported activation: {act!r}")

    B, F_in = x.shape
    out_size = params[-1][0].shape[1]

    # Lane-dense padding: features -> multiple of 128, batch -> multiple of 8.
    F_in_pad = _round_up(F_in, 128)
    B_pad = _round_up(B, 8)
    x_p = jnp.pad(x, ((0, B_pad - B), (0, F_in_pad - F_in)))

    # Pad params; weights in bf16 (MXU dtype), biases kept in f32.
    padded = []
    prev_pad = F_in_pad
    for (w, b) in params:
        fin, fout = w.shape
        fout_pad = _round_up(fout, 128)
        w_p = jnp.pad(w, ((0, prev_pad - fin), (0, fout_pad - fout)))
        w_p = w_p.astype(mxu_dtype)
        b_p = jnp.pad(jnp.reshape(b, (1, -1)), ((0, 0), (0, fout_pad - fout)))
        b_p = b_p.astype(jnp.float32)
        padded.append((w_p, b_p))
        prev_pad = fout_pad

    vmem_budget = _vmem_budget_bytes()

    # Split the layer stack into groups whose parameters fit comfortably in
    # VMEM (graceful fallback for large models on v7x's 64 MiB/TC): each extra
    # group costs one HBM round-trip of the activation.
    param_budget = vmem_budget // 2
    groups, cur, cur_bytes = [], [], 0
    for (w_p, b_p) in padded:
        nb = w_p.size * w_p.dtype.itemsize + b_p.size * b_p.dtype.itemsize
        if cur and cur_bytes + nb > param_budget:
            groups.append(cur)
            cur, cur_bytes = [], 0
        cur.append((w_p, b_p))
        cur_bytes += nb
    groups.append(cur)
    # TODO(synk): a single layer whose weights exceed VMEM would also need an
    # output-feature grid axis with an accumulator; not needed at these sizes.

    h = x_p
    for group in groups:
        try:
            h = _call_group(h, group, act, x.dtype, mxu_dtype, vmem_budget,
                            use_buffered=True)
        except Exception:
            # Fallback if this JAX version rejects pl.Buffered(1) specs.
            h = _call_group(h, group, act, x.dtype, mxu_dtype, vmem_budget,
                            use_buffered=False)

    return h[:B, :out_size]


# ----------------------------------------------------------------------------
if __name__ == "__main__":
    key = jax.random.PRNGKey(0)

    batch = 8
    input_size = 32
    layer_sizes = [64, 32]

    key, kx = jax.random.split(key)
    x = jax.random.normal(kx, (batch, input_size), jnp.float32)
    params = init_transformer_params(key, input_size, layer_sizes)

    # Default act='tanh'
    out = jax.block_until_ready(transformer_forward(params, x, act="tanh"))
    assert out.shape == (batch, layer_sizes[-1])

    # Reference with the same numerics (bf16 matmul, f32 accumulation).
    def ref_forward(x, params, act_fn):
        h = x
        for (w, b) in params:
            y = jnp.dot(h.astype(jnp.bfloat16), w.astype(jnp.bfloat16),
                        preferred_element_type=jnp.float32) + b
            h = act_fn(y)
        return h

    ref = ref_forward(x, params, jnp.tanh)
    assert jnp.allclose(out, ref, atol=2e-3, rtol=2e-3)

    # Also exercise a non-default activation to verify act plumbing (relu).
    out_relu = jax.block_until_ready(transformer_forward(params, x, act="relu"))
    ref_relu = ref_forward(x, params, lambda y: jnp.maximum(y, 0.0))
    assert jnp.allclose(out_relu, ref_relu, atol=2e-3, rtol=2e-3)

    print("KERNEL_OK")
</pallas_src>

<mosaic_0001>
module attributes {stable_mosaic.version = 11 : i64} {
  func.func @_mlp_kernel(%arg0: i32, %arg1: memref<8x128xf32, #tpu.memory_space<vmem>>, %arg2: memref<128x128xbf16, #tpu.memory_space<vmem>>, %arg3: memref<1x128xf32, #tpu.memory_space<vmem>>, %arg4: memref<128x128xbf16, #tpu.memory_space<vmem>>, %arg5: memref<1x128xf32, #tpu.memory_space<vmem>>, %arg6: memref<8x128xf32, #tpu.memory_space<vmem>>) attributes {dimension_semantics = [#tpu.dimension_semantics<parallel>], iteration_bounds = array<i64: 1>, scalar_prefetch = 0 : i64, scratch_operands = 0 : i64, tpu.core_type = #tpu.core_type<tc>, window_params = [{transform_indices = @transform_0, window_bounds = array<i64: 8, 128>}, {pipeline_mode = #tpu.pipeline_mode<synchronous>, transform_indices = @transform_1, window_bounds = array<i64: 128, 128>}, {pipeline_mode = #tpu.pipeline_mode<synchronous>, transform_indices = @transform_2, window_bounds = array<i64: 1, 128>}, {pipeline_mode = #tpu.pipeline_mode<synchronous>, transform_indices = @transform_3, window_bounds = array<i64: 128, 128>}, {pipeline_mode = #tpu.pipeline_mode<synchronous>, transform_indices = @transform_4, window_bounds = array<i64: 1, 128>}, {transform_indices = @transform_5, window_bounds = array<i64: 8, 128>}]} {
    %c0 = arith.constant 0 : index
    %c0_0 = arith.constant 0 : index
    %0 = vector.load %arg1[%c0, %c0_0] : memref<8x128xf32, #tpu.memory_space<vmem>>, vector<8x128xf32>
    %1 = arith.truncf %0 : vector<8x128xf32> to vector<8x128xbf16>
    %c0_1 = arith.constant 0 : index
    %c0_2 = arith.constant 0 : index
    %2 = vector.load %arg2[%c0_1, %c0_2] : memref<128x128xbf16, #tpu.memory_space<vmem>>, vector<128x128xbf16>
    %cst = arith.constant dense<0.000000e+00> : vector<8x128xf32>
    %3 = tpu.matmul %1, %2, %cst {dimension_numbers = #tpu.dot_dimension_numbers<[1], [0], [0], [1], [0, 0, 1, 1], [], []>} : vector<8x128xbf16>, vector<128x128xbf16>, vector<8x128xf32> -> vector<8x128xf32>
    %c0_3 = arith.constant 0 : index
    %c0_4 = arith.constant 0 : index
    %4 = vector.load %arg3[%c0_3, %c0_4] : memref<1x128xf32, #tpu.memory_space<vmem>>, vector<1x128xf32>
    %5 = vector.broadcast %4 : vector<1x128xf32> to vector<8x128xf32>
    %6 = arith.addf %3, %5 : vector<8x128xf32>
    %7 = math.tanh %6 : vector<8x128xf32>
    %8 = arith.truncf %7 : vector<8x128xf32> to vector<8x128xbf16>
    %c0_5 = arith.constant 0 : index
    %c0_6 = arith.constant 0 : index
    %9 = vector.load %arg4[%c0_5, %c0_6] : memref<128x128xbf16, #tpu.memory_space<vmem>>, vector<128x128xbf16>
    %cst_7 = arith.constant dense<0.000000e+00> : vector<8x128xf32>
    %10 = tpu.matmul %8, %9, %cst_7 {dimension_numbers = #tpu.dot_dimension_numbers<[1], [0], [0], [1], [0, 0, 1, 1], [], []>} : vector<8x128xbf16>, vector<128x128xbf16>, vector<8x128xf32> -> vector<8x128xf32>
    %c0_8 = arith.constant 0 : index
    %c0_9 = arith.constant 0 : index
    %11 = vector.load %arg5[%c0_8, %c0_9] : memref<1x128xf32, #tpu.memory_space<vmem>>, vector<1x128xf32>
    %12 = vector.broadcast %11 : vector<1x128xf32> to vector<8x128xf32>
    %13 = arith.addf %10, %12 : vector<8x128xf32>
    %14 = math.tanh %13 : vector<8x128xf32>
    %c0_10 = arith.constant 0 : index
    %c0_11 = arith.constant 0 : index
    %15 = vector.load %arg6[%c0_10, %c0_11] : memref<8x128xf32, #tpu.memory_space<vmem>>, vector<8x128xf32>
    tpu.vector_store %arg6[%c0_10, %c0_11], %14 {strides = array<i32>} : memref<8x128xf32, #tpu.memory_space<vmem>>, vector<8x128xf32>,
    return
  }
  func.func @transform_0(%arg0: i32) -> (i32, i32) {
    %c0_i32 = arith.constant 0 : i32
    %c0_i32_0 = arith.constant 0 : i32
    return %arg0, %c0_i32 : i32, i32
  }
  func.func @transform_1(%arg0: i32) -> (i32, i32) {
    %c0_i32 = arith.constant 0 : i32
    %c0_i32_0 = arith.constant 0 : i32
    %c0_i32_1 = arith.constant 0 : i32
    return %c0_i32, %c0_i32_0 : i32, i32
  }
  func.func @transform_2(%arg0: i32) -> (i32, i32) {
    %c0_i32 = arith.constant 0 : i32
    %c0_i32_0 = arith.constant 0 : i32
    %c0_i32_1 = arith.constant 0 : i32
    return %c0_i32, %c0_i32_0 : i32, i32
  }
  func.func @transform_3(%arg0: i32) -> (i32, i32) {
    %c0_i32 = arith.constant 0 : i32
    %c0_i32_0 = arith.constant 0 : i32
    %c0_i32_1 = arith.constant 0 : i32
    return %c0_i32, %c0_i32_0 : i32, i32
  }
  func.func @transform_4(%arg0: i32) -> (i32, i32) {
    %c0_i32 = arith.constant 0 : i32
    %c0_i32_0 = arith.constant 0 : i32
    %c0_i32_1 = arith.constant 0 : i32
    return %c0_i32, %c0_i32_0 : i32, i32
  }
  func.func @transform_5(%arg0: i32) -> (i32, i32) {
    %c0_i32 = arith.constant 0 : i32
    %c0_i32_0 = arith.constant 0 : i32
    return %arg0, %c0_i32 : i32, i32
  }
}

module attributes {stable_mosaic.version = 11 : i64} {
  func.func @_mlp_kernel(%arg0: i32, %arg1: memref<8x128xf32, #tpu.memory_space<vmem>>, %arg2: memref<128x128xbf16, #tpu.memory_space<vmem>>, %arg3: memref<1x128xf32, #tpu.memory_space<vmem>>, %arg4: memref<128x128xbf16, #tpu.memory_space<vmem>>, %arg5: memref<1x128xf32, #tpu.memory_space<vmem>>, %arg6: memref<8x128xf32, #tpu.memory_space<vmem>>) attributes {dimension_semantics = [#tpu.dimension_semantics<parallel>], iteration_bounds = array<i64: 1>, scalar_prefetch = 0 : i64, scratch_operands = 0 : i64, tpu.core_type = #tpu.core_type<tc>, window_params = [{transform_indices = @transform_0, window_bounds = array<i64: 8, 128>}, {pipeline_mode = #tpu.pipeline_mode<synchronous>, transform_indices = @transform_1, window_bounds = array<i64: 128, 128>}, {pipeline_mode = #tpu.pipeline_mode<synchronous>, transform_indices = @transform_2, window_bounds = array<i64: 1, 128>}, {pipeline_mode = #tpu.pipeline_mode<synchronous>, transform_indices = @transform_3, window_bounds = array<i64: 128, 128>}, {pipeline_mode = #tpu.pipeline_mode<synchronous>, transform_indices = @transform_4, window_bounds = array<i64: 1, 128>}, {transform_indices = @transform_5, window_bounds = array<i64: 8, 128>}]} {
    %c0 = arith.constant 0 : index
    %c0_0 = arith.constant 0 : index
    %0 = vector.load %arg1[%c0, %c0_0] : memref<8x128xf32, #tpu.memory_space<vmem>>, vector<8x128xf32>
    %1 = arith.truncf %0 : vector<8x128xf32> to vector<8x128xbf16>
    %c0_1 = arith.constant 0 : index
    %c0_2 = arith.constant 0 : index
    %2 = vector.load %arg2[%c0_1, %c0_2] : memref<128x128xbf16, #tpu.memory_space<vmem>>, vector<128x128xbf16>
    %cst = arith.constant dense<0.000000e+00> : vector<8x128xf32>
    %3 = tpu.matmul %1, %2, %cst {dimension_numbers = #tpu.dot_dimension_numbers<[1], [0], [0], [1], [0, 0, 1, 1], [], []>} : vector<8x128xbf16>, vector<128x128xbf16>, vector<8x128xf32> -> vector<8x128xf32>
    %c0_3 = arith.constant 0 : index
    %c0_4 = arith.constant 0 : index
    %4 = vector.load %arg3[%c0_3, %c0_4] : memref<1x128xf32, #tpu.memory_space<vmem>>, vector<1x128xf32>
    %5 = vector.broadcast %4 : vector<1x128xf32> to vector<8x128xf32>
    %6 = arith.addf %3, %5 : vector<8x128xf32>
    %7 = math.tanh %6 : vector<8x128xf32>
    %8 = arith.truncf %7 : vector<8x128xf32> to vector<8x128xbf16>
    %c0_5 = arith.constant 0 : index
    %c0_6 = arith.constant 0 : index
    %9 = vector.load %arg4[%c0_5, %c0_6] : memref<128x128xbf16, #tpu.memory_space<vmem>>, vector<128x128xbf16>
    %cst_7 = arith.constant dense<0.000000e+00> : vector<8x128xf32>
    %10 = tpu.matmul %8, %9, %cst_7 {dimension_numbers = #tpu.dot_dimension_numbers<[1], [0], [0], [1], [0, 0, 1, 1], [], []>} : vector<8x128xbf16>, vector<128x128xbf16>, vector<8x128xf32> -> vector<8x128xf32>
    %c0_8 = arith.constant 0 : index
    %c0_9 = arith.constant 0 : index
    %11 = vector.load %arg5[%c0_8, %c0_9] : memref<1x128xf32, #tpu.memory_space<vmem>>, vector<1x128xf32>
    %12 = vector.broadcast %11 : vector<1x128xf32> to vector<8x128xf32>
    %13 = arith.addf %10, %12 : vector<8x128xf32>
    %14 = math.tanh %13 : vector<8x128xf32>
    %c0_10 = arith.constant 0 : index
    %c0_11 = arith.constant 0 : index
    %15 = vector.load %arg6[%c0_10, %c0_11] : memref<8x128xf32, #tpu.memory_space<vmem>>, vector<8x128xf32>
    tpu.vector_store %arg6[%c0_10, %c0_11], %14 {strides = array<i32>} : memref<8x128xf32, #tpu.memory_space<vmem>>, vector<8x128xf32>,
    return
  }
  func.func @transform_0(%arg0: i32) -> (i32, i32) {
    %c0_i32 = arith.constant 0 : i32
    %c0_i32_0 = arith.constant 0 : i32
    return %arg0, %c0_i32 : i32, i32
  }
  func.func @transform_1(%arg0: i32) -> (i32, i32) {
    %c0_i32 = arith.constant 0 : i32
    %c0_i32_0 = arith.constant 0 : i32
    %c0_i32_1 = arith.constant 0 : i32
    return %c0_i32, %c0_i32_0 : i32, i32
  }
  func.func @transform_2(%arg0: i32) -> (i32, i32) {
    %c0_i32 = arith.constant 0 : i32
    %c0_i32_0 = arith.constant 0 : i32
    %c0_i32_1 = arith.constant 0 : i32
    return %c0_i32, %c0_i32_0 : i32, i32
  }
  func.func @transform_3(%arg0: i32) -> (i32, i32) {
    %c0_i32 = arith.constant 0 : i32
    %c0_i32_0 = arith.constant 0 : i32
    %c0_i32_1 = arith.constant 0 : i32
    return %c0_i32, %c0_i32_0 : i32, i32
  }
  func.func @transform_4(%arg0: i32) -> (i32, i32) {
    %c0_i32 = arith.constant 0 : i32
    %c0_i32_0 = arith.constant 0 : i32
    %c0_i32_1 = arith.constant 0 : i32
    return %c0_i32, %c0_i32_0 : i32, i32
  }
  func.func @transform_5(%arg0: i32) -> (i32, i32) {
    %c0_i32 = arith.constant 0 : i32
    %c0_i32_0 = arith.constant 0 : i32
    return %arg0, %c0_i32 : i32, i32
  }
}

</mosaic_0001>

<llo_original>
// kernel: tpu_custom_call.1
$region0: #{tpu_custom_call.1}
  #allocation0 [shape = 'u32[]', space=smem, size = 0x4, offset = 0x4, fixed_abs, tag = 'smem constant byte address 0x4 - core index']
  #allocation1 [shape = 'u32[144,128]{1,0:T(1,128)}', space=vmem, size = 0x12000, scoped, tag = 'internal scratch']
  %s0 = inlined_call_operand.hbm [shape: f32[8,128], index: 0, kind: input, shape index: {}]
  %s1 = inlined_call_operand.hbm [shape: bf16[128,128], index: 1, kind: input, shape index: {}]
  %s2 = inlined_call_operand.vmem [shape: f32[1,128], index: 2, kind: input, shape index: {}]
  %s3 = inlined_call_operand.hbm [shape: bf16[128,128], index: 3, kind: input, shape index: {}]
  %s4 = inlined_call_operand.vmem [shape: f32[1,128], index: 4, kind: input, shape index: {}]
  %s5 = inlined_call_operand.hbm [shape: f32[8,128], index: 5, kind: output, shape index: {}]
  %s6 = sld [smem:[#allocation0]]
  $region42: #{tpu_custom_call.1} parent=0
    _
  %s8 = ssub.s32 1, %s6
  %s9 = scalar_select 0, %s8, %s6
  $region1: #{tpu_custom_call.1} parent=0
    #allocation2 [shape = 'u8[4096]{0}', space=vmem, size = 0x1000, scoped, tag = 'input window, operand 0, single buffered']
    #allocation3 [shape = 's32[1]{0}', space=sflag, size = 0x4, scoped, tag = 'scoped memory for tpu_custom_call.1']
    #allocation4 [shape = 's32[1]{0}', space=sflag, size = 0x4, scoped, tag = 'scoped memory for tpu_custom_call.1']
    #allocation5 [shape = 'u8[32768]{0}', space=vmem, size = 0x8000, scoped, tag = 'input window, operand 1, single buffered']
    #allocation6 [shape = 's32[1]{0}', space=sflag, size = 0x4, scoped, tag = 'scoped memory for tpu_custom_call.1']
    #allocation7 [shape = 'u8[32768]{0}', space=vmem, size = 0x8000, scoped, tag = 'input window, operand 3, single buffered']
    #allocation8 [shape = 'u8[4096]{0}', space=vmem, size = 0x1000, scoped, tag = 'output window, operand 0, single buffered']
    %10 = vsyncpa [#allocation3], 0
    %11 = vsyncpa [#allocation6], 0
    %12 = vsyncpa [#allocation4], 0
    // Predicated region
    $region2: #{tpu_custom_call.1} parent=1 // pred_check
      _
    $region3: #{tpu_custom_call.1} parent=1 // pred_check_branch
      %14 = sbr.rel (0) target = $region5
    $region4: #{tpu_custom_call.1} parent=1 // pred_region
      %s16 = ssub.s32 128, 128
      %17 = vsyncadd [#allocation3], %s16
      %s19 = sshll.u32 [#allocation2], 4
      %s20 = int_to_ptr.vmem [resolvable:$true] %s19
      %22 = dma.hbm_to_vmem [thread:$0]  %s0, 128, %s20, [#allocation3]
    $region5: #{tpu_custom_call.1} parent=1 // pred_fallthru
      _
    // Predicated region
    $region6: #{tpu_custom_call.1} parent=1 // pred_check
      _
    $region7: #{tpu_custom_call.1} parent=1 // pred_check_branch
      %24 = sbr.rel (0) target = $region9
    $region8: #{tpu_custom_call.1} parent=1 // pred_region
      %s26 = ssub.s32 1024, 1024
      %27 = vsyncadd [#allocation6], %s26
      %s28 = sshll.u32 [#allocation5], 4
      %s29 = int_to_ptr.vmem [resolvable:$true] %s28
      %34 = dma.hbm_to_vmem [thread:$0]  %s1, 1024, %s29, [#allocation6], 64, 64, 4
    $region9: #{tpu_custom_call.1} parent=1 // pred_fallthru
      _
    // Predicated region
    $region10: #{tpu_custom_call.1} parent=1 // pred_check
      _
    $region11: #{tpu_custom_call.1} parent=1 // pred_check_branch
      %36 = sbr.rel (0) target = $region13
    $region12: #{tpu_custom_call.1} parent=1 // pred_region
      _
    $region13: #{tpu_custom_call.1} parent=1 // pred_fallthru
      _
    // Predicated region
    $region14: #{tpu_custom_call.1} parent=1 // pred_check
      _
    $region15: #{tpu_custom_call.1} parent=1 // pred_check_branch
      %38 = sbr.rel (0) target = $region17
    $region16: #{tpu_custom_call.1} parent=1 // pred_region
      %s40 = ssub.s32 1024, 1024
      %41 = vsyncadd [#allocation6], %s40
      %s42 = sshll.u32 [#allocation7], 4
      %s43 = int_to_ptr.vmem [resolvable:$true] %s42
      %48 = dma.hbm_to_vmem [thread:$0]  %s3, 1024, %s43, [#allocation6], 64, 64, 4
    $region17: #{tpu_custom_call.1} parent=1 // pred_fallthru
      _
    // Predicated region
    $region18: #{tpu_custom_call.1} parent=1 // pred_check
      _
    $region19: #{tpu_custom_call.1} parent=1 // pred_check_branch
      %50 = sbr.rel (0) target = $region21
    $region20: #{tpu_custom_call.1} parent=1 // pred_region
      _
    $region21: #{tpu_custom_call.1} parent=1 // pred_fallthru
      _
    // Predicated region
    $region22: #{tpu_custom_call.1} parent=1 // pred_check
      _
    $region23: #{tpu_custom_call.1} parent=1 // pred_check_branch
      %52 = sbr.rel (0) target = $region25
    $region24: #{tpu_custom_call.1} parent=1 // pred_region
      %53 = dma.done [#allocation3], 128
    $region25: #{tpu_custom_call.1} parent=1 // pred_fallthru
      _
    // Predicated region
    $region26: #{tpu_custom_call.1} parent=1 // pred_check
      _
    $region27: #{tpu_custom_call.1} parent=1 // pred_check_branch
      %55 = sbr.rel (0) target = $region29
    $region28: #{tpu_custom_call.1} parent=1 // pred_region
      %56 = dma.done [#allocation6], 1024
    $region29: #{tpu_custom_call.1} parent=1 // pred_fallthru
      _
    // Predicated region
    $region30: #{tpu_custom_call.1} parent=1 // pred_check
      _
    $region31: #{tpu_custom_call.1} parent=1 // pred_check_branch
      %58 = sbr.rel (0) target = $region33
    $region32: #{tpu_custom_call.1} parent=1 // pred_region
      %59 = dma.done [#allocation6], 1024
    $region33: #{tpu_custom_call.1} parent=1 // pred_fallthru
      _
    %v61 = vld [vmem:[#allocation2] sm:$0xff]
    %v62 = vpack.c.bf16 %v61, %v61
    %v63 = vld [vmem:[#allocation5] sm:$0xf]
    %v64 = vld [vmem:[#allocation5 + $0x4] sm:$0xf]
    %v65 = vld [vmem:[#allocation5 + $0x8] sm:$0xf]
    %v66 = vld [vmem:[#allocation5 + $0xc] sm:$0xf]
    %v67 = vld [vmem:[#allocation5 + $0x10] sm:$0xf]
    %v68 = vld [vmem:[#allocation5 + $0x14] sm:$0xf]
    %v69 = vld [vmem:[#allocation5 + $0x18] sm:$0xf]
    %v70 = vld [vmem:[#allocation5 + $0x1c] sm:$0xf]
    %v71 = vld [vmem:[#allocation5 + $0x20] sm:$0xf]
    %v72 = vld [vmem:[#allocation5 + $0x24] sm:$0xf]
    %v73 = vld [vmem:[#allocation5 + $0x28] sm:$0xf]
    %v74 = vld [vmem:[#allocation5 + $0x2c] sm:$0xf]
    %v75 = vld [vmem:[#allocation5 + $0x30] sm:$0xf]
    %v76 = vld [vmem:[#allocation5 + $0x34] sm:$0xf]
    %v77 = vld [vmem:[#allocation5 + $0x38] sm:$0xf]
    %v78 = vld [vmem:[#allocation5 + $0x3c] sm:$0xf]
    %v79 = vld [vmem:[%s2] sm:$0x1]
    %v81 = vlaneseq
    %v82 = vshrl.u32 %v81, 7
    %v83 = vsub.s32 0, %v82
    %v84 = vrot.slane %v79, %v83
    %v102 = vunpack.c.l.b16 %v63
    %v103 = vunpack.c.l.b16 %v64
    %v104 = vunpack.c.l.b16 %v65
    %v105 = vunpack.c.l.b16 %v66
    %v106 = vunpack.c.l.b16 %v67
    %v107 = vunpack.c.l.b16 %v68
    %v108 = vunpack.c.l.b16 %v69
    %v109 = vunpack.c.l.b16 %v70
    %v110 = vunpack.c.l.b16 %v71
    %v111 = vunpack.c.l.b16 %v72
    %v112 = vunpack.c.l.b16 %v73
    %v113 = vunpack.c.l.b16 %v74
    %v114 = vunpack.c.l.b16 %v75
    %v115 = vunpack.c.l.b16 %v76
    %v116 = vunpack.c.l.b16 %v77
    %v117 = vunpack.c.l.b16 %v78
    %v118 = vpack.c.b16 %v103, %v102
    %v119 = vpack.c.b16 %v105, %v104
    %v120 = vpack.c.b16 %v107, %v106
    %v121 = vpack.c.b16 %v109, %v108
    %v122 = vpack.c.b16 %v111, %v110
    %v123 = vpack.c.b16 %v113, %v112
    %v124 = vpack.c.b16 %v115, %v114
    %v125 = vpack.c.b16 %v117, %v116
    %134 = vmatprep.subr.bf16.mxu0 0
    %135 = vmatpush1.bf16.msra.mxu0 %v118
    %136 = vmatprep.subr.bf16.mxu0 0
    %137 = vmatpush1.bf16.msra.mxu0 %v119
    %138 = vmatprep.subr.bf16.mxu0 0
    %139 = vmatpush1.bf16.msra.mxu0 %v120
    %140 = vmatprep.subr.bf16.mxu0 0
    %141 = vmatpush1.bf16.msra.mxu0 %v121
    %142 = vmatprep.subr.bf16.mxu0 0
    %143 = vmatpush1.bf16.msra.mxu0 %v122
    %144 = vmatprep.subr.bf16.mxu0 0
    %145 = vmatpush1.bf16.msra.mxu0 %v123
    %146 = vmatprep.subr.bf16.mxu0 0
    %147 = vmatpush1.bf16.msra.mxu0 %v124
    %148 = vmatprep.subr.bf16.mxu0 0
    %149 = vmatpush1.bf16.msra.mxu0 %v125
    %150 = vmatprep.subr.bf16.mxu0 0
    %151 = vmatpush1.bf16.msra.mxu0 0
    %152 = vmatprep.subr.bf16.mxu0 0
    %153 = vmatpush1.bf16.msra.mxu0 0
    %154 = vmatprep.subr.bf16.mxu0 0
    %155 = vmatpush1.bf16.msra.mxu0 0
    %156 = vmatprep.subr.bf16.mxu0 0
    %157 = vmatpush1.bf16.msra.mxu0 0
    %158 = vmatprep.subr.bf16.mxu0 0
    %159 = vmatpush1.bf16.msra.mxu0 0
    %160 = vmatprep.subr.bf16.mxu0 0
    %161 = vmatpush1.bf16.msra.mxu0 0
    %162 = vmatprep.subr.bf16.mxu0 0
    %163 = vmatpush1.bf16.msra.mxu0 0
    %164 = vmatprep.subr.bf16.mxu0 0
    %165 = vmatpush1.bf16.msra.mxu0 0
    %166 = vmatprep.mubr.bf16.mxu0 0
    %167 = vmatmul.mubr.bf16.gmra.mrb[0].mxu0 %v62
    %v168 = vpop.f32.mrb[0].mxu0
    %v169 = vadd.f32 %v84, %v168
    %v170 = vpop.f32.mrb[0].mxu0
    %v171 = vpop.f32.mrb[0].mxu0
    %v172 = vpop.f32.mrb[0].mxu0
    %173 = vdwg.mxu0
    %v174 = vtanh.pop %v169
    %v175 = vpack.c.bf16 %v174, %v174
    %v176 = vld [vmem:[#allocation7] sm:$0xf]
    %v177 = vld [vmem:[#allocation7 + $0x4] sm:$0xf]
    %v178 = vld [vmem:[#allocation7 + $0x8] sm:$0xf]
    %v179 = vld [vmem:[#allocation7 + $0xc] sm:$0xf]
    %v180 = vld [vmem:[#allocation7 + $0x10] sm:$0xf]
    %v181 = vld [vmem:[#allocation7 + $0x14] sm:$0xf]
    %v182 = vld [vmem:[#allocation7 + $0x18] sm:$0xf]
    %v183 = vld [vmem:[#allocation7 + $0x1c] sm:$0xf]
    %v184 = vld [vmem:[#allocation7 + $0x20] sm:$0xf]
    %v185 = vld [vmem:[#allocation7 + $0x24] sm:$0xf]
    %v186 = vld [vmem:[#allocation7 + $0x28] sm:$0xf]
    %v187 = vld [vmem:[#allocation7 + $0x2c] sm:$0xf]
    %v188 = vld [vmem:[#allocation7 + $0x30] sm:$0xf]
    %v189 = vld [vmem:[#allocation7 + $0x34] sm:$0xf]
    %v190 = vld [vmem:[#allocation7 + $0x38] sm:$0xf]
    %v191 = vld [vmem:[#allocation7 + $0x3c] sm:$0xf]
    %v192 = vld [vmem:[%s4] sm:$0x1]
    %v194 = vlaneseq
    %v195 = vshrl.u32 %v194, 7
    %v196 = vsub.s32 0, %v195
    %v197 = vrot.slane %v192, %v196
    %v215 = vunpack.c.l.b16 %v176
    %v216 = vunpack.c.l.b16 %v177
    %v217 = vunpack.c.l.b16 %v178
    %v218 = vunpack.c.l.b16 %v179
    %v219 = vunpack.c.l.b16 %v180
    %v220 = vunpack.c.l.b16 %v181
    %v221 = vunpack.c.l.b16 %v182
    %v222 = vunpack.c.l.b16 %v183
    %v223 = vunpack.c.l.b16 %v184
    %v224 = vunpack.c.l.b16 %v185
    %v225 = vunpack.c.l.b16 %v186
    %v226 = vunpack.c.l.b16 %v187
    %v227 = vunpack.c.l.b16 %v188
    %v228 = vunpack.c.l.b16 %v189
    %v229 = vunpack.c.l.b16 %v190
    %v230 = vunpack.c.l.b16 %v191
    %v231 = vpack.c.b16 %v216, %v215
    %v232 = vpack.c.b16 %v218, %v217
    %v233 = vpack.c.b16 %v220, %v219
    %v234 = vpack.c.b16 %v222, %v221
    %v235 = vpack.c.b16 %v224, %v223
    %v236 = vpack.c.b16 %v226, %v225
    %v237 = vpack.c.b16 %v228, %v227
    %v238 = vpack.c.b16 %v230, %v229
    %247 = vmatprep.subr.bf16.mxu0 0
    %248 = vmatpush1.bf16.msra.mxu0 %v231
    %249 = vmatprep.subr.bf16.mxu0 0
    %250 = vmatpush1.bf16.msra.mxu0 %v232
    %251 = vmatprep.subr.bf16.mxu0 0
    %252 = vmatpush1.bf16.msra.mxu0 %v233
    %253 = vmatprep.subr.bf16.mxu0 0
    %254 = vmatpush1.bf16.msra.mxu0 %v234
    %255 = vmatprep.subr.bf16.mxu0 0
    %256 = vmatpush1.bf16.msra.mxu0 %v235
    %257 = vmatprep.subr.bf16.mxu0 0
    %258 = vmatpush1.bf16.msra.mxu0 %v236
    %259 = vmatprep.subr.bf16.mxu0 0
    %260 = vmatpush1.bf16.msra.mxu0 %v237
    %261 = vmatprep.subr.bf16.mxu0 0
    %262 = vmatpush1.bf16.msra.mxu0 %v238
    %263 = vmatprep.subr.bf16.mxu0 0
    %264 = vmatpush1.bf16.msra.mxu0 0
    %265 = vmatprep.subr.bf16.mxu0 0
    %266 = vmatpush1.bf16.msra.mxu0 0
    %267 = vmatprep.subr.bf16.mxu0 0
    %268 = vmatpush1.bf16.msra.mxu0 0
    %269 = vmatprep.subr.bf16.mxu0 0
    %270 = vmatpush1.bf16.msra.mxu0 0
    %271 = vmatprep.subr.bf16.mxu0 0
    %272 = vmatpush1.bf16.msra.mxu0 0
    %273 = vmatprep.subr.bf16.mxu0 0
    %274 = vmatpush1.bf16.msra.mxu0 0
    %275 = vmatprep.subr.bf16.mxu0 0
    %276 = vmatpush1.bf16.msra.mxu0 0
    %277 = vmatprep.subr.bf16.mxu0 0
    %278 = vmatpush1.bf16.msra.mxu0 0
    %279 = vmatprep.mubr.bf16.mxu0 0
    %280 = vmatmul.mubr.bf16.gmra.mrb[0].mxu0 %v175
    %v281 = vpop.f32.mrb[0].mxu0
    %v282 = vadd.f32 %v197, %v281
    %v283 = vpop.f32.mrb[0].mxu0
    %v284 = vpop.f32.mrb[0].mxu0
    %v285 = vpop.f32.mrb[0].mxu0
    %286 = vdwg.mxu0
    %v287 = vtanh.pop %v282
    %288 = vst [vmem:[#allocation8] sm:$0xff] %v287
    // Predicated region
    $region34: #{tpu_custom_call.1} parent=1 // pred_check
      _
    $region35: #{tpu_custom_call.1} parent=1 // pred_check_branch
      %290 = sbr.rel (0) target = $region37
    $region36: #{tpu_custom_call.1} parent=1 // pred_region
      %s292 = ssub.s32 128, 128
      %293 = vsyncadd [#allocation4], %s292
      %s295 = sshll.u32 [#allocation8], 4
      %s296 = int_to_ptr.vmem [resolvable:$true] %s295
      %298 = dma.vmem_to_hbm [thread:$0]  %s296, 128, %s5, [#allocation4]
    $region37: #{tpu_custom_call.1} parent=1 // pred_fallthru
      _
    // Predicated region
    $region38: #{tpu_custom_call.1} parent=1 // pred_check
      _
    $region39: #{tpu_custom_call.1} parent=1 // pred_check_branch
      %300 = sbr.rel (0) target = $region41
    $region40: #{tpu_custom_call.1} parent=1 // pred_region
      %301 = dma.done [#allocation4], 128
    $region41: #{tpu_custom_call.1} parent=1 // pred_fallthru
      _
    %302 = vsyncpa [#allocation3], 1
    %303 = vsyncpa [#allocation6], 1
    %304 = vsyncpa [#allocation4], 1

// kernel: tpu_custom_call.1
$region0: #{tpu_custom_call.1}
  #allocation0 [shape = 'u32[]', space=smem, size = 0x4, offset = 0x4, fixed_abs, tag = 'smem constant byte address 0x4 - core index']
  #allocation1 [shape = 'u32[144,128]{1,0:T(1,128)}', space=vmem, size = 0x12000, scoped, tag = 'internal scratch']
  %s0 = inlined_call_operand.hbm [shape: f32[8,128], index: 0, kind: input, shape index: {}]
  %s1 = inlined_call_operand.hbm [shape: bf16[128,128], index: 1, kind: input, shape index: {}]
  %s2 = inlined_call_operand.vmem [shape: f32[1,128], index: 2, kind: input, shape index: {}]
  %s3 = inlined_call_operand.hbm [shape: bf16[128,128], index: 3, kind: input, shape index: {}]
  %s4 = inlined_call_operand.vmem [shape: f32[1,128], index: 4, kind: input, shape index: {}]
  %s5 = inlined_call_operand.hbm [shape: f32[8,128], index: 5, kind: output, shape index: {}]
  %s6 = sld [smem:[#allocation0]]
  $region42: #{tpu_custom_call.1} parent=0
    _
  %s8 = ssub.s32 1, %s6
  %s9 = scalar_select 0, %s8, %s6
  $region1: #{tpu_custom_call.1} parent=0
    #allocation2 [shape = 'u8[4096]{0}', space=vmem, size = 0x1000, scoped, tag = 'input window, operand 0, single buffered']
    #allocation3 [shape = 's32[1]{0}', space=sflag, size = 0x4, scoped, tag = 'scoped memory for tpu_custom_call.1']
    #allocation4 [shape = 's32[1]{0}', space=sflag, size = 0x4, scoped, tag = 'scoped memory for tpu_custom_call.1']
    #allocation5 [shape = 'u8[32768]{0}', space=vmem, size = 0x8000, scoped, tag = 'input window, operand 1, single buffered']
    #allocation6 [shape = 's32[1]{0}', space=sflag, size = 0x4, scoped, tag = 'scoped memory for tpu_custom_call.1']
    #allocation7 [shape = 'u8[32768]{0}', space=vmem, size = 0x8000, scoped, tag = 'input window, operand 3, single buffered']
    #allocation8 [shape = 'u8[4096]{0}', space=vmem, size = 0x1000, scoped, tag = 'output window, operand 0, single buffered']
    %10 = vsyncpa [#allocation3], 0
    %11 = vsyncpa [#allocation6], 0
    %12 = vsyncpa [#allocation4], 0
    // Predicated region
    $region2: #{tpu_custom_call.1} parent=1 // pred_check
      _
    $region3: #{tpu_custom_call.1} parent=1 // pred_check_branch
      %14 = sbr.rel (0) target = $region5
    $region4: #{tpu_custom_call.1} parent=1 // pred_region
      %s16 = ssub.s32 128, 128
      %17 = vsyncadd [#allocation3], %s16
      %s19 = sshll.u32 [#allocation2], 4
      %s20 = int_to_ptr.vmem [resolvable:$true] %s19
      %22 = dma.hbm_to_vmem [thread:$0]  %s0, 128, %s20, [#allocation3]
    $region5: #{tpu_custom_call.1} parent=1 // pred_fallthru
      _
    // Predicated region
    $region6: #{tpu_custom_call.1} parent=1 // pred_check
      _
    $region7: #{tpu_custom_call.1} parent=1 // pred_check_branch
      %24 = sbr.rel (0) target = $region9
    $region8: #{tpu_custom_call.1} parent=1 // pred_region
      %s26 = ssub.s32 1024, 1024
      %27 = vsyncadd [#allocation6], %s26
      %s28 = sshll.u32 [#allocation5], 4
      %s29 = int_to_ptr.vmem [resolvable:$true] %s28
      %34 = dma.hbm_to_vmem [thread:$0]  %s1, 1024, %s29, [#allocation6], 64, 64, 4
    $region9: #{tpu_custom_call.1} parent=1 // pred_fallthru
      _
    // Predicated region
    $region10: #{tpu_custom_call.1} parent=1 // pred_check
      _
    $region11: #{tpu_custom_call.1} parent=1 // pred_check_branch
      %36 = sbr.rel (0) target = $region13
    $region12: #{tpu_custom_call.1} parent=1 // pred_region
      _
    $region13: #{tpu_custom_call.1} parent=1 // pred_fallthru
      _
    // Predicated region
    $region14: #{tpu_custom_call.1} parent=1 // pred_check
      _
    $region15: #{tpu_custom_call.1} parent=1 // pred_check_branch
      %38 = sbr.rel (0) target = $region17
    $region16: #{tpu_custom_call.1} parent=1 // pred_region
      %s40 = ssub.s32 1024, 1024
      %41 = vsyncadd [#allocation6], %s40
      %s42 = sshll.u32 [#allocation7], 4
      %s43 = int_to_ptr.vmem [resolvable:$true] %s42
      %48 = dma.hbm_to_vmem [thread:$0]  %s3, 1024, %s43, [#allocation6], 64, 64, 4
    $region17: #{tpu_custom_call.1} parent=1 // pred_fallthru
      _
    // Predicated region
    $region18: #{tpu_custom_call.1} parent=1 // pred_check
      _
    $region19: #{tpu_custom_call.1} parent=1 // pred_check_branch
      %50 = sbr.rel (0) target = $region21
    $region20: #{tpu_custom_call.1} parent=1 // pred_region
      _
    $region21: #{tpu_custom_call.1} parent=1 // pred_fallthru
      _
    // Predicated region
    $region22: #{tpu_custom_call.1} parent=1 // pred_check
      _
    $region23: #{tpu_custom_call.1} parent=1 // pred_check_branch
      %52 = sbr.rel (0) target = $region25
    $region24: #{tpu_custom_call.1} parent=1 // pred_region
      %53 = dma.done [#allocation3], 128
    $region25: #{tpu_custom_call.1} parent=1 // pred_fallthru
      _
    // Predicated region
    $region26: #{tpu_custom_call.1} parent=1 // pred_check
      _
    $region27: #{tpu_custom_call.1} parent=1 // pred_check_branch
      %55 = sbr.rel (0) target = $region29
    $region28: #{tpu_custom_call.1} parent=1 // pred_region
      %56 = dma.done [#allocation6], 1024
    $region29: #{tpu_custom_call.1} parent=1 // pred_fallthru
      _
    // Predicated region
    $region30: #{tpu_custom_call.1} parent=1 // pred_check
      _
    $region31: #{tpu_custom_call.1} parent=1 // pred_check_branch
      %58 = sbr.rel (0) target = $region33
    $region32: #{tpu_custom_call.1} parent=1 // pred_region
      %59 = dma.done [#allocation6], 1024
    $region33: #{tpu_custom_call.1} parent=1 // pred_fallthru
      _
    %v61 = vld [vmem:[#allocation2] sm:$0xff]
    %v62 = vpack.c.bf16 %v61, %v61
    %v63 = vld [vmem:[#allocation5] sm:$0xf]
    %v64 = vld [vmem:[#allocation5 + $0x4] sm:$0xf]
    %v65 = vld [vmem:[#allocation5 + $0x8] sm:$0xf]
    %v66 = vld [vmem:[#allocation5 + $0xc] sm:$0xf]
    %v67 = vld [vmem:[#allocation5 + $0x10] sm:$0xf]
    %v68 = vld [vmem:[#allocation5 + $0x14] sm:$0xf]
    %v69 = vld [vmem:[#allocation5 + $0x18] sm:$0xf]
    %v70 = vld [vmem:[#allocation5 + $0x1c] sm:$0xf]
    %v71 = vld [vmem:[#allocation5 + $0x20] sm:$0xf]
    %v72 = vld [vmem:[#allocation5 + $0x24] sm:$0xf]
    %v73 = vld [vmem:[#allocation5 + $0x28] sm:$0xf]
    %v74 = vld [vmem:[#allocation5 + $0x2c] sm:$0xf]
    %v75 = vld [vmem:[#allocation5 + $0x30] sm:$0xf]
    %v76 = vld [vmem:[#allocation5 + $0x34] sm:$0xf]
    %v77 = vld [vmem:[#allocation5 + $0x38] sm:$0xf]
    %v78 = vld [vmem:[#allocation5 + $0x3c] sm:$0xf]
    %v79 = vld [vmem:[%s2] sm:$0x1]
    %v81 = vlaneseq
    %v82 = vshrl.u32 %v81, 7
    %v83 = vsub.s32 0, %v82
    %v84 = vrot.slane %v79, %v83
    %v102 = vunpack.c.l.b16 %v63
    %v103 = vunpack.c.l.b16 %v64
    %v104 = vunpack.c.l.b16 %v65
    %v105 = vunpack.c.l.b16 %v66
    %v106 = vunpack.c.l.b16 %v67
    %v107 = vunpack.c.l.b16 %v68
    %v108 = vunpack.c.l.b16 %v69
    %v109 = vunpack.c.l.b16 %v70
    %v110 = vunpack.c.l.b16 %v71
    %v111 = vunpack.c.l.b16 %v72
    %v112 = vunpack.c.l.b16 %v73
    %v113 = vunpack.c.l.b16 %v74
    %v114 = vunpack.c.l.b16 %v75
    %v115 = vunpack.c.l.b16 %v76
    %v116 = vunpack.c.l.b16 %v77
    %v117 = vunpack.c.l.b16 %v78
    %v118 = vpack.c.b16 %v103, %v102
    %v119 = vpack.c.b16 %v105, %v104
    %v120 = vpack.c.b16 %v107, %v106
    %v121 = vpack.c.b16 %v109, %v108
    %v122 = vpack.c.b16 %v111, %v110
    %v123 = vpack.c.b16 %v113, %v112
    %v124 = vpack.c.b16 %v115, %v114
    %v125 = vpack.c.b16 %v117, %v116
    %134 = vmatprep.subr.bf16.mxu0 0
    %135 = vmatpush1.bf16.msra.mxu0 %v118
    %136 = vmatprep.subr.bf16.mxu0 0
    %137 = vmatpush1.bf16.msra.mxu0 %v119
    %138 = vmatprep.subr.bf16.mxu0 0
    %139 = vmatpush1.bf16.msra.mxu0 %v120
    %140 = vmatprep.subr.bf16.mxu0 0
    %141 = vmatpush1.bf16.msra.mxu0 %v121
    %142 = vmatprep.subr.bf16.mxu0 0
    %143 = vmatpush1.bf16.msra.mxu0 %v122
    %144 = vmatprep.subr.bf16.mxu0 0
    %145 = vmatpush1.bf16.msra.mxu0 %v123
    %146 = vmatprep.subr.bf16.mxu0 0
    %147 = vmatpush1.bf16.msra.mxu0 %v124
    %148 = vmatprep.subr.bf16.mxu0 0
    %149 = vmatpush1.bf16.msra.mxu0 %v125
    %150 = vmatprep.subr.bf16.mxu0 0
    %151 = vmatpush1.bf16.msra.mxu0 0
    %152 = vmatprep.subr.bf16.mxu0 0
    %153 = vmatpush1.bf16.msra.mxu0 0
    %154 = vmatprep.subr.bf16.mxu0 0
    %155 = vmatpush1.bf16.msra.mxu0 0
    %156 = vmatprep.subr.bf16.mxu0 0
    %157 = vmatpush1.bf16.msra.mxu0 0
    %158 = vmatprep.subr.bf16.mxu0 0
    %159 = vmatpush1.bf16.msra.mxu0 0
    %160 = vmatprep.subr.bf16.mxu0 0
    %161 = vmatpush1.bf16.msra.mxu0 0
    %162 = vmatprep.subr.bf16.mxu0 0
    %163 = vmatpush1.bf16.msra.mxu0 0
    %164 = vmatprep.subr.bf16.mxu0 0
    %165 = vmatpush1.bf16.msra.mxu0 0
    %166 = vmatprep.mubr.bf16.mxu0 0
    %167 = vmatmul.mubr.bf16.gmra.mrb[0].mxu0 %v62
    %v168 = vpop.f32.mrb[0].mxu0
    %v169 = vadd.f32 %v84, %v168
    %v170 = vpop.f32.mrb[0].mxu0
    %v171 = vpop.f32.mrb[0].mxu0
    %v172 = vpop.f32.mrb[0].mxu0
    %173 = vdwg.mxu0
    %v174 = vtanh.pop %v169
    %v175 = vpack.c.bf16 %v174, %v174
    %v176 = vld [vmem:[#allocation7] sm:$0xf]
    %v177 = vld [vmem:[#allocation7 + $0x4] sm:$0xf]
    %v178 = vld [vmem:[#allocation7 + $0x8] sm:$0xf]
    %v179 = vld [vmem:[#allocation7 + $0xc] sm:$0xf]
    %v180 = vld [vmem:[#allocation7 + $0x10] sm:$0xf]
    %v181 = vld [vmem:[#allocation7 + $0x14] sm:$0xf]
    %v182 = vld [vmem:[#allocation7 + $0x18] sm:$0xf]
    %v183 = vld [vmem:[#allocation7 + $0x1c] sm:$0xf]
    %v184 = vld [vmem:[#allocation7 + $0x20] sm:$0xf]
    %v185 = vld [vmem:[#allocation7 + $0x24] sm:$0xf]
    %v186 = vld [vmem:[#allocation7 + $0x28] sm:$0xf]
    %v187 = vld [vmem:[#allocation7 + $0x2c] sm:$0xf]
    %v188 = vld [vmem:[#allocation7 + $0x30] sm:$0xf]
    %v189 = vld [vmem:[#allocation7 + $0x34] sm:$0xf]
    %v190 = vld [vmem:[#allocation7 + $0x38] sm:$0xf]
    %v191 = vld [vmem:[#allocation7 + $0x3c] sm:$0xf]
    %v192 = vld [vmem:[%s4] sm:$0x1]
    %v194 = vlaneseq
    %v195 = vshrl.u32 %v194, 7
    %v196 = vsub.s32 0, %v195
    %v197 = vrot.slane %v192, %v196
    %v215 = vunpack.c.l.b16 %v176
    %v216 = vunpack.c.l.b16 %v177
    %v217 = vunpack.c.l.b16 %v178
    %v218 = vunpack.c.l.b16 %v179
    %v219 = vunpack.c.l.b16 %v180
    %v220 = vunpack.c.l.b16 %v181
    %v221 = vunpack.c.l.b16 %v182
    %v222 = vunpack.c.l.b16 %v183
    %v223 = vunpack.c.l.b16 %v184
    %v224 = vunpack.c.l.b16 %v185
    %v225 = vunpack.c.l.b16 %v186
    %v226 = vunpack.c.l.b16 %v187
    %v227 = vunpack.c.l.b16 %v188
    %v228 = vunpack.c.l.b16 %v189
    %v229 = vunpack.c.l.b16 %v190
    %v230 = vunpack.c.l.b16 %v191
    %v231 = vpack.c.b16 %v216, %v215
    %v232 = vpack.c.b16 %v218, %v217
    %v233 = vpack.c.b16 %v220, %v219
    %v234 = vpack.c.b16 %v222, %v221
    %v235 = vpack.c.b16 %v224, %v223
    %v236 = vpack.c.b16 %v226, %v225
    %v237 = vpack.c.b16 %v228, %v227
    %v238 = vpack.c.b16 %v230, %v229
    %247 = vmatprep.subr.bf16.mxu0 0
    %248 = vmatpush1.bf16.msra.mxu0 %v231
    %249 = vmatprep.subr.bf16.mxu0 0
    %250 = vmatpush1.bf16.msra.mxu0 %v232
    %251 = vmatprep.subr.bf16.mxu0 0
    %252 = vmatpush1.bf16.msra.mxu0 %v233
    %253 = vmatprep.subr.bf16.mxu0 0
    %254 = vmatpush1.bf16.msra.mxu0 %v234
    %255 = vmatprep.subr.bf16.mxu0 0
    %256 = vmatpush1.bf16.msra.mxu0 %v235
    %257 = vmatprep.subr.bf16.mxu0 0
    %258 = vmatpush1.bf16.msra.mxu0 %v236
    %259 = vmatprep.subr.bf16.mxu0 0
    %260 = vmatpush1.bf16.msra.mxu0 %v237
    %261 = vmatprep.subr.bf16.mxu0 0
    %262 = vmatpush1.bf16.msra.mxu0 %v238
    %263 = vmatprep.subr.bf16.mxu0 0
    %264 = vmatpush1.bf16.msra.mxu0 0
    %265 = vmatprep.subr.bf16.mxu0 0
    %266 = vmatpush1.bf16.msra.mxu0 0
    %267 = vmatprep.subr.bf16.mxu0 0
    %268 = vmatpush1.bf16.msra.mxu0 0
    %269 = vmatprep.subr.bf16.mxu0 0
    %270 = vmatpush1.bf16.msra.mxu0 0
    %271 = vmatprep.subr.bf16.mxu0 0
    %272 = vmatpush1.bf16.msra.mxu0 0
    %273 = vmatprep.subr.bf16.mxu0 0
    %274 = vmatpush1.bf16.msra.mxu0 0
    %275 = vmatprep.subr.bf16.mxu0 0
    %276 = vmatpush1.bf16.msra.mxu0 0
    %277 = vmatprep.subr.bf16.mxu0 0
    %278 = vmatpush1.bf16.msra.mxu0 0
    %279 = vmatprep.mubr.bf16.mxu0 0
    %280 = vmatmul.mubr.bf16.gmra.mrb[0].mxu0 %v175
    %v281 = vpop.f32.mrb[0].mxu0
    %v282 = vadd.f32 %v197, %v281
    %v283 = vpop.f32.mrb[0].mxu0
    %v284 = vpop.f32.mrb[0].mxu0
    %v285 = vpop.f32.mrb[0].mxu0
    %286 = vdwg.mxu0
    %v287 = vtanh.pop %v282
    %288 = vst [vmem:[#allocation8] sm:$0xff] %v287
    // Predicated region
    $region34: #{tpu_custom_call.1} parent=1 // pred_check
      _
    $region35: #{tpu_custom_call.1} parent=1 // pred_check_branch
      %290 = sbr.rel (0) target = $region37
    $region36: #{tpu_custom_call.1} parent=1 // pred_region
      %s292 = ssub.s32 128, 128
      %293 = vsyncadd [#allocation4], %s292
      %s295 = sshll.u32 [#allocation8], 4
      %s296 = int_to_ptr.vmem [resolvable:$true] %s295
      %298 = dma.vmem_to_hbm [thread:$0]  %s296, 128, %s5, [#allocation4]
    $region37: #{tpu_custom_call.1} parent=1 // pred_fallthru
      _
    // Predicated region
    $region38: #{tpu_custom_call.1} parent=1 // pred_check
      _
    $region39: #{tpu_custom_call.1} parent=1 // pred_check_branch
      %300 = sbr.rel (0) target = $region41
    $region40: #{tpu_custom_call.1} parent=1 // pred_region
      %301 = dma.done [#allocation4], 128
    $region41: #{tpu_custom_call.1} parent=1 // pred_fallthru
      _
    %302 = vsyncpa [#allocation3], 1
    %303 = vsyncpa [#allocation6], 1
    %304 = vsyncpa [#allocation4], 1

</llo_original>
